<compile_context>
chip_gen: v5e
topology: v5e:2x2
jax: 0.10.0
libtpu: 0.0.40
codegen_flags: <defaults>
</compile_context>

<pallas_src>
import jax
import jax.numpy as jnp
from jax.experimental import pallas as pl
from jax.experimental.pallas import tpu as pltpu


def nconv_kernel(a_ref, x_ref, o_ref):
    # a_ref: (V, N)  resident adjacency
    # x_ref: (G, N, T) group of (b, f) slabs
    # o_ref: (G, V, T)
    a = a_ref[...]
    G = x_ref.shape[0]  # static block size -> fully unrolled loop of 2-D MXU matmuls
    for g in range(G):
        o_ref[g] = jnp.dot(
            a, x_ref[g], preferred_element_type=jnp.float32
        ).astype(o_ref.dtype)


def _pick_group(BF, N, T, V, itemsize, *, max_group=64, buffer_budget=16 * 1024 * 1024):
    """Largest group size G that (a) fits the double-buffered x/out tiles in the
    VMEM budget, (b) keeps >= 2 grid steps when possible (v7x megacore), and
    (c) divides B*F exactly."""
    per_g = 2 * (N * T + V * T) * itemsize  # x + out, double-buffered
    g = max(1, min(max_group, buffer_budget // max(per_g, 1), BF))
    if BF >= 2:
        g = max(1, min(g, BF // 2))  # keep at least 2 grid steps for 2-TC chips
    while BF % g:
        g -= 1
    return g, per_g


def nconv(A, x):
    """Pallas equivalent of torch.einsum('vn,bfnt->bfvt', A, x).contiguous()."""
    V, N = A.shape
    B, F, N2, T = x.shape
    assert N == N2, "contraction dims must match"

    BF = B * F
    x3 = x.reshape(BF, N, T)  # no-copy view; flattened (b, f) axis

    itemsize = jnp.dtype(x.dtype).itemsize
    G, per_g = _pick_group(BF, N, T, V, itemsize)
    grid = (BF // G,)

    # VMEM budget: grouped x/out double buffers + resident A + headroom,
    # clamped to [16 MiB, 48 MiB] so it is valid on v5e/v6e and safe on v7x.
    a_bytes = V * N * jnp.dtype(A.dtype).itemsize
    vmem_limit = int(min(max(G * per_g + 2 * a_bytes + (8 << 20), 16 << 20), 48 << 20))

    out3 = pl.pallas_call(
        nconv_kernel,
        out_shape=jax.ShapeDtypeStruct((BF, V, T), x.dtype),
        grid=grid,
        in_specs=[
            # A: constant block index -> stays resident in VMEM across the grid.
            pl.BlockSpec((V, N), lambda i: (0, 0)),
            # x: one (G, N, T) group of slabs per grid step.
            pl.BlockSpec((G, N, T), lambda i: (i, 0, 0)),
        ],
        out_specs=pl.BlockSpec((G, V, T), lambda i: (i, 0, 0)),
        compiler_params=pltpu.CompilerParams(
            dimension_semantics=("parallel",),
            vmem_limit_bytes=vmem_limit,
        ),
    )(A, x3)

    return out3.reshape(B, F, V, T)


if __name__ == "__main__":
    # Small shapes consistent with the einsum: A: (V, N), x: (B, F, N, T)
    B, F, N, T, V = 2, 4, 8, 16, 8

    key = jax.random.PRNGKey(0)
    kA, kx = jax.random.split(key)
    A = jax.random.normal(kA, (V, N), dtype=jnp.float32)
    x = jax.random.normal(kx, (B, F, N, T), dtype=jnp.float32)

    out = nconv(A, x)
    out = jax.block_until_ready(out)

    # Reference check against plain JAX einsum (same semantics as the torch module).
    ref = jnp.einsum("vn,bfnt->bfvt", A, x)
    assert out.shape == (B, F, V, T)
    assert jnp.allclose(out, ref, atol=1e-5, rtol=1e-5)

    print("KERNEL_OK")
</pallas_src>

<mosaic_0001>
module attributes {stable_mosaic.version = 11 : i64} {
  func.func @nconv_kernel(%arg0: i32, %arg1: memref<8x8xf32, #tpu.memory_space<vmem>>, %arg2: memref<4x8x16xf32, #tpu.memory_space<vmem>>, %arg3: memref<4x8x16xf32, #tpu.memory_space<vmem>>) attributes {dimension_semantics = [#tpu.dimension_semantics<parallel>], iteration_bounds = array<i64: 2>, scalar_prefetch = 0 : i64, scratch_operands = 0 : i64, tpu.core_type = #tpu.core_type<tc>, window_params = [{pipeline_mode = #tpu.pipeline_mode<synchronous>, transform_indices = @transform_0, window_bounds = array<i64: 8, 8>}, {transform_indices = @transform_1, window_bounds = array<i64: 4, 8, 16>}, {transform_indices = @transform_2, window_bounds = array<i64: 4, 8, 16>}]} {
    %c0 = arith.constant 0 : index
    %c0_0 = arith.constant 0 : index
    %0 = vector.load %arg1[%c0, %c0_0] : memref<8x8xf32, #tpu.memory_space<vmem>>, vector<8x8xf32>
    %c0_1 = arith.constant 0 : index
    %c0_2 = arith.constant 0 : index
    %c0_3 = arith.constant 0 : index
    %1 = vector.load %arg2[%c0_1, %c0_2, %c0_3] : memref<4x8x16xf32, #tpu.memory_space<vmem>>, vector<1x8x16xf32>
    %2 = vector.shape_cast %1 : vector<1x8x16xf32> to vector<8x16xf32>
    %cst = arith.constant dense<0.000000e+00> : vector<8x16xf32>
    %3 = tpu.matmul %0, %2, %cst {dimension_numbers = #tpu.dot_dimension_numbers<[1], [0], [0], [1], [0, 0, 1, 1], [], []>} : vector<8x8xf32>, vector<8x16xf32>, vector<8x16xf32> -> vector<8x16xf32>
    %c0_4 = arith.constant 0 : index
    %c0_5 = arith.constant 0 : index
    %c0_6 = arith.constant 0 : index
    %4 = vector.load %arg3[%c0_4, %c0_5, %c0_6] : memref<4x8x16xf32, #tpu.memory_space<vmem>>, vector<1x8x16xf32>
    %5 = vector.shape_cast %4 : vector<1x8x16xf32> to vector<8x16xf32>
    %6 = vector.shape_cast %3 : vector<8x16xf32> to vector<1x8x16xf32>
    tpu.vector_store %arg3[%c0_4, %c0_5, %c0_6], %6 {strides = array<i32>} : memref<4x8x16xf32, #tpu.memory_space<vmem>>, vector<1x8x16xf32>,
    %c1 = arith.constant 1 : index
    %c0_7 = arith.constant 0 : index
    %c0_8 = arith.constant 0 : index
    %7 = vector.load %arg2[%c1, %c0_7, %c0_8] : memref<4x8x16xf32, #tpu.memory_space<vmem>>, vector<1x8x16xf32>
    %8 = vector.shape_cast %7 : vector<1x8x16xf32> to vector<8x16xf32>
    %cst_9 = arith.constant dense<0.000000e+00> : vector<8x16xf32>
    %9 = tpu.matmul %0, %8, %cst_9 {dimension_numbers = #tpu.dot_dimension_numbers<[1], [0], [0], [1], [0, 0, 1, 1], [], []>} : vector<8x8xf32>, vector<8x16xf32>, vector<8x16xf32> -> vector<8x16xf32>
    %c1_10 = arith.constant 1 : index
    %c0_11 = arith.constant 0 : index
    %c0_12 = arith.constant 0 : index
    %10 = vector.load %arg3[%c1_10, %c0_11, %c0_12] : memref<4x8x16xf32, #tpu.memory_space<vmem>>, vector<1x8x16xf32>
    %11 = vector.shape_cast %10 : vector<1x8x16xf32> to vector<8x16xf32>
    %12 = vector.shape_cast %9 : vector<8x16xf32> to vector<1x8x16xf32>
    tpu.vector_store %arg3[%c1_10, %c0_11, %c0_12], %12 {strides = array<i32>} : memref<4x8x16xf32, #tpu.memory_space<vmem>>, vector<1x8x16xf32>,
    %c2 = arith.constant 2 : index
    %c0_13 = arith.constant 0 : index
    %c0_14 = arith.constant 0 : index
    %13 = vector.load %arg2[%c2, %c0_13, %c0_14] : memref<4x8x16xf32, #tpu.memory_space<vmem>>, vector<1x8x16xf32>
    %14 = vector.shape_cast %13 : vector<1x8x16xf32> to vector<8x16xf32>
    %cst_15 = arith.constant dense<0.000000e+00> : vector<8x16xf32>
    %15 = tpu.matmul %0, %14, %cst_15 {dimension_numbers = #tpu.dot_dimension_numbers<[1], [0], [0], [1], [0, 0, 1, 1], [], []>} : vector<8x8xf32>, vector<8x16xf32>, vector<8x16xf32> -> vector<8x16xf32>
    %c2_16 = arith.constant 2 : index
    %c0_17 = arith.constant 0 : index
    %c0_18 = arith.constant 0 : index
    %16 = vector.load %arg3[%c2_16, %c0_17, %c0_18] : memref<4x8x16xf32, #tpu.memory_space<vmem>>, vector<1x8x16xf32>
    %17 = vector.shape_cast %16 : vector<1x8x16xf32> to vector<8x16xf32>
    %18 = vector.shape_cast %15 : vector<8x16xf32> to vector<1x8x16xf32>
    tpu.vector_store %arg3[%c2_16, %c0_17, %c0_18], %18 {strides = array<i32>} : memref<4x8x16xf32, #tpu.memory_space<vmem>>, vector<1x8x16xf32>,
    %c3 = arith.constant 3 : index
    %c0_19 = arith.constant 0 : index
    %c0_20 = arith.constant 0 : index
    %19 = vector.load %arg2[%c3, %c0_19, %c0_20] : memref<4x8x16xf32, #tpu.memory_space<vmem>>, vector<1x8x16xf32>
    %20 = vector.shape_cast %19 : vector<1x8x16xf32> to vector<8x16xf32>
    %cst_21 = arith.constant dense<0.000000e+00> : vector<8x16xf32>
    %21 = tpu.matmul %0, %20, %cst_21 {dimension_numbers = #tpu.dot_dimension_numbers<[1], [0], [0], [1], [0, 0, 1, 1], [], []>} : vector<8x8xf32>, vector<8x16xf32>, vector<8x16xf32> -> vector<8x16xf32>
    %c3_22 = arith.constant 3 : index
    %c0_23 = arith.constant 0 : index
    %c0_24 = arith.constant 0 : index
    %22 = vector.load %arg3[%c3_22, %c0_23, %c0_24] : memref<4x8x16xf32, #tpu.memory_space<vmem>>, vector<1x8x16xf32>
    %23 = vector.shape_cast %22 : vector<1x8x16xf32> to vector<8x16xf32>
    %24 = vector.shape_cast %21 : vector<8x16xf32> to vector<1x8x16xf32>
    tpu.vector_store %arg3[%c3_22, %c0_23, %c0_24], %24 {strides = array<i32>} : memref<4x8x16xf32, #tpu.memory_space<vmem>>, vector<1x8x16xf32>,
    return
  }
  func.func @transform_0(%arg0: i32) -> (i32, i32) {
    %c0_i32 = arith.constant 0 : i32
    %c0_i32_0 = arith.constant 0 : i32
    %c0_i32_1 = arith.constant 0 : i32
    return %c0_i32, %c0_i32_0 : i32, i32
  }
  func.func @transform_1(%arg0: i32) -> (i32, i32, i32) {
    %c0_i32 = arith.constant 0 : i32
    %c0_i32_0 = arith.constant 0 : i32
    %c0_i32_1 = arith.constant 0 : i32
    return %arg0, %c0_i32, %c0_i32_0 : i32, i32, i32
  }
  func.func @transform_2(%arg0: i32) -> (i32, i32, i32) {
    %c0_i32 = arith.constant 0 : i32
    %c0_i32_0 = arith.constant 0 : i32
    %c0_i32_1 = arith.constant 0 : i32
    return %arg0, %c0_i32, %c0_i32_0 : i32, i32, i32
  }
}

</mosaic_0001>

<llo_original>
// kernel: tpu_custom_call.1
$region0: #{tpu_custom_call.1}
  #allocation0 [shape = 'u32[]', space=smem, size = 0x4, offset = 0x4, fixed_abs, tag = 'smem constant byte address 0x4 - core index']
  #allocation1 [shape = 'u32[72,128]{1,0:T(1,128)}', space=vmem, size = 0x9000, scoped, tag = 'internal scratch']
  %s0 = inlined_call_operand.hbm [shape: f32[8,8], index: 0, kind: input, shape index: {}]
  %s1 = inlined_call_operand.hbm [shape: f32[8,8,16], index: 1, kind: input, shape index: {}]
  %s2 = inlined_call_operand.hbm [shape: f32[8,8,16], index: 2, kind: output, shape index: {}]
  %s3 = sld [smem:[#allocation0]]
  $region49: #{tpu_custom_call.1} parent=0
    _
  %s5 = ssub.s32 1, %s3
  %s6 = scalar_select 0, %s5, %s3
  $region1: #{tpu_custom_call.1} parent=0
    #allocation2 [shape = 'u8[4096]{0}', space=vmem, size = 0x1000, scoped, tag = 'input window, operand 0, single buffered']
    #allocation3 [shape = 's32[2]{0}', space=sflag, size = 0x8, scoped, tag = 'scoped memory for tpu_custom_call.1']
    #allocation4 [shape = 's32[2]{0}', space=sflag, size = 0x8, scoped, tag = 'scoped memory for tpu_custom_call.1']
    #allocation5 [shape = 'u8[32768]{0}', space=vmem, size = 0x8000, scoped, tag = 'input window, operand 1']
    #allocation6 [shape = 's32[2]{0}', space=sflag, size = 0x8, scoped, tag = 'scoped memory for tpu_custom_call.1']
    #allocation7 [shape = 'u8[32768]{0}', space=vmem, size = 0x8000, scoped, tag = 'output window, operand 0']
    %7 = vsyncpa [#allocation3], 0
    %8 = vsyncpa [#allocation6], 0
    %s9 = scalar_lea.sflag [#allocation6], 1
    %10 = vsyncpa %s9, 0
    %11 = vsyncpa [#allocation4], 0
    %s12 = scalar_lea.sflag [#allocation4], 1
    %13 = vsyncpa %s12, 0
    loop: start=0, step=1, limit=4
    $region2: #{tpu_custom_call.1} parent=1 // loop_pre_header
      _
    $region3: #{tpu_custom_call.1} parent=1 // loop_header
      %s15 = sphi 0, %s19
      %p16 = scmp.ge.s32.totalorder %s15, 4
      %s23 = sphi 0, %s23
      %s25 = sphi 0, %s23
      %s26 = sphi 0, %s25
      %s40 = sphi 0, %s26
      %s46 = sphi 0, %s48
      %s49 = sphi 0, %s46
      %s50 = sphi 0, %s49
      %s66 = sphi 0, %s50
      %s72 = sphi 0, %s74
      %s75 = sphi 0, %s72
      %s76 = sphi 0, %s75
      %s92 = sphi 0, %s76
    $region4: #{tpu_custom_call.1} parent=1 // loop_header_branch
      %18 = sbr.rel (%p16) target = $region8
    $region5: #{tpu_custom_call.1} parent=1 // loop_body
      %s20 = ssub.s32 %s15, 1
      %s21 = ssub.s32 %s15, 2
      %s22 = sadd.s32 %s15, 1
      %s24 = sadd.s32 %s23, 1
      %p27 = scmp.eq.s32.totalorder %s15, 1
      %p28 = scmp.ne.s32.totalorder %s23, %s25
      %p29 = scmp.eq.s32.totalorder %s15, 0
      %p30 = por %p28, %p29
      %p31 = scmp.ne.s32.totalorder %s23, %s25
      %p32 = scmp.eq.s32.totalorder %s20, 1
      %p33 = por %p31, %p32
      %p34 = scmp.ne.s32.totalorder %s25, %s26
      %p35 = scmp.eq.s32.totalorder %s20, 0
      %p36 = por %p34, %p35
      %p37 = scmp.ne.s32.totalorder %s25, %s26
      %p38 = scmp.eq.s32.totalorder %s21, 1
      %p39 = por %p37, %p38
      %p41 = scmp.ne.s32.totalorder %s26, %s40
      %p42 = scmp.eq.s32.totalorder %s21, 0
      %p43 = por %p41, %p42
      %s44 = ssub.s32 %s15, %s22
      %p45 = scmp.eq.s32.totalorder %s44, 0
      %s47 = sadd.s32 %s46, 1
      %s48 = scalar_select %p45, %s46, %s47
      %p51 = pneg %p45
      %p52 = scmp.eq.s32.totalorder %s15, 1
      %p53 = por %p51, %p52
      %p54 = scmp.ne.s32.totalorder %s46, %s49
      %p55 = scmp.eq.s32.totalorder %s15, 0
      %p56 = por %p54, %p55
      %p57 = scmp.ne.s32.totalorder %s46, %s49
      %p58 = scmp.eq.s32.totalorder %s20, 1
      %p59 = por %p57, %p58
      %p60 = scmp.ne.s32.totalorder %s49, %s50
      %p61 = scmp.eq.s32.totalorder %s20, 0
      %p62 = por %p60, %p61
      %p63 = scmp.ne.s32.totalorder %s49, %s50
      %p64 = scmp.eq.s32.totalorder %s21, 1
      %p65 = por %p63, %p64
      %p67 = scmp.ne.s32.totalorder %s50, %s66
      %p68 = scmp.eq.s32.totalorder %s21, 0
      %p69 = por %p67, %p68
      %s70 = ssub.s32 %s15, %s22
      %p71 = scmp.eq.s32.totalorder %s70, 0
      %s73 = sadd.s32 %s72, 1
      %s74 = scalar_select %p71, %s72, %s73
      %p77 = pneg %p71
      %p78 = scmp.eq.s32.totalorder %s15, 1
      %p79 = por %p77, %p78
      %p80 = scmp.ne.s32.totalorder %s72, %s75
      %p81 = scmp.eq.s32.totalorder %s15, 0
      %p82 = por %p80, %p81
      %p83 = scmp.ne.s32.totalorder %s72, %s75
      %p84 = scmp.eq.s32.totalorder %s20, 1
      %p85 = por %p83, %p84
      %p86 = scmp.ne.s32.totalorder %s75, %s76
      %p87 = scmp.eq.s32.totalorder %s20, 0
      %p88 = por %p86, %p87
      %p89 = scmp.ne.s32.totalorder %s75, %s76
      %p90 = scmp.eq.s32.totalorder %s21, 1
      %p91 = por %p89, %p90
      %p93 = scmp.ne.s32.totalorder %s76, %s92
      %p94 = scmp.eq.s32.totalorder %s21, 0
      %p95 = por %p93, %p94
      %p96 = scmp.le.s32.totalorder 1, %s15
      %p97 = scmp.lt.s32.totalorder %s15, 3
      %p98 = pnand %p96, %p97
      %p99 = pneg %p98
      // Predicated region
      $region9: #{tpu_custom_call.1} parent=5 // pred_check
        _
      $region10: #{tpu_custom_call.1} parent=5 // pred_check_branch
        %101 = sbr.rel (%p98) target = $region12
      $region11: #{tpu_custom_call.1} parent=5 // pred_region
        %s102 = ssub.s32 %s15, 1
        // Predicated region
        $region13: #{tpu_custom_call.1} parent=11 // pred_check
          %p103 = pneg %p36
        $region14: #{tpu_custom_call.1} parent=11 // pred_check_branch
          %105 = sbr.rel (%p103) target = $region16
        $region15: #{tpu_custom_call.1} parent=11 // pred_region
          %107 = vsyncadd [#allocation3], 0
          %s109 = sshll.u32 %s0, 4
          %s110 = int_to_ptr.hbm [resolvable:$true] %s109
          %s111 = sshll.u32 [#allocation2], 4
          %s112 = int_to_ptr.vmem [resolvable:$true] %s111
          %114 = dma.hbm_to_vmem [thread:$0]  %s110, 128, %s112, [#allocation3]
        $region16: #{tpu_custom_call.1} parent=11 // pred_fallthru
          _
      $region12: #{tpu_custom_call.1} parent=5 // pred_fallthru
        _
      %p115 = scmp.lt.s32.totalorder %s15, 2
      // Predicated region
      $region17: #{tpu_custom_call.1} parent=5 // pred_check
        %p116 = pneg %p115
      $region18: #{tpu_custom_call.1} parent=5 // pred_check_branch
        %118 = sbr.rel (%p116) target = $region20
      $region19: #{tpu_custom_call.1} parent=5 // pred_region
        // Predicated region
        $region21: #{tpu_custom_call.1} parent=19 // pred_check
          %p119 = pneg %p56
        $region22: #{tpu_custom_call.1} parent=19 // pred_check_branch
          %121 = sbr.rel (%p119) target = $region24
        $region23: #{tpu_custom_call.1} parent=19 // pred_region
          %s122 = sand.u32 %s46, 1
          %s123 = scalar_lea.sflag [#allocation6], %s122
          %s124 = sand.u32 %s46, 1
          %s125 = smul.addr %s124, 32
          %s126 = scalar_lea.vmem [#allocation5], %s125
          %s127 = smul.u32 4, %s15
          %129 = vsyncadd %s123, 0
          %s130 = smul.addr %s127, 8
          %s131 = scalar_lea.hbm %s1, %s130
          %s132 = sshll.u32 %s131, 4
          %s133 = int_to_ptr.hbm [resolvable:$true] %s132
          %s134 = sshll.u32 %s126, 4
          %s135 = int_to_ptr.vmem [resolvable:$true] %s134
          %140 = dma.hbm_to_vmem [thread:$0]  %s133, 512, %s135, %s123, 128, 128, 8
        $region24: #{tpu_custom_call.1} parent=19 // pred_fallthru
          _
      $region20: #{tpu_custom_call.1} parent=5 // pred_fallthru
        _
      %p141 = scmp.le.s32.totalorder 1, %s15
      %p142 = scmp.lt.s32.totalorder %s15, 3
      %p143 = pnand %p141, %p142
      %p144 = pneg %p143
      // Predicated region
      $region25: #{tpu_custom_call.1} parent=5 // pred_check
        _
      $region26: #{tpu_custom_call.1} parent=5 // pred_check_branch
        %146 = sbr.rel (%p143) target = $region28
      $region27: #{tpu_custom_call.1} parent=5 // pred_region
        %s147 = ssub.s32 %s15, 1
        // Predicated region
        $region29: #{tpu_custom_call.1} parent=27 // pred_check
          %p148 = pneg %p36
        $region30: #{tpu_custom_call.1} parent=27 // pred_check_branch
          %150 = sbr.rel (%p148) target = $region32
        $region31: #{tpu_custom_call.1} parent=27 // pred_region
          %152 = dma.done [#allocation3], 128
        $region32: #{tpu_custom_call.1} parent=27 // pred_fallthru
          _
        %s153 = sand.u32 %s49, 1
        %s154 = scalar_lea.sflag [#allocation6], %s153
        %s155 = sand.u32 %s49, 1
        %s156 = smul.addr %s155, 32
        %s157 = scalar_lea.vmem [#allocation5], %s156
        // Predicated region
        $region33: #{tpu_custom_call.1} parent=27 // pred_check
          %p158 = pneg %p62
        $region34: #{tpu_custom_call.1} parent=27 // pred_check_branch
          %160 = sbr.rel (%p158) target = $region36
        $region35: #{tpu_custom_call.1} parent=27 // pred_region
          %162 = dma.done %s154, 512
        $region36: #{tpu_custom_call.1} parent=27 // pred_fallthru
          _
        %p163 = pneg %p36
        %p164 = pneg %p33
        %s165 = sand.u32 %s49, 1
        %s166 = scalar_lea.sflag [#allocation6], %s165
        %s167 = sand.u32 %s49, 1
        %s168 = smul.addr %s167, 32
        %s169 = scalar_lea.vmem [#allocation5], %s168
        %p170 = pneg %p62
        %p171 = pneg %p59
        %p172 = pneg %p88
        %p173 = pneg %p85
        %s174 = sand.u32 %s75, 1
        %s175 = scalar_lea.sflag [#allocation4], %s174
        %s176 = sand.u32 %s75, 1
        %s177 = smul.addr %s176, 32
        %s178 = scalar_lea.vmem [#allocation7], %s177
        %s179 = smul.u32 4, %s20
        %s180 = smul.u32 4, %s20
        %v181 = vld [vmem:[#allocation2] sm:$0xff]
        %v182 = vld [vmem:[%s157] sm:$0xff]
        %vm183 = vcmask 64512
        %v185 = vsel %vm183, %v181, 0
        %187 = vmatpush.msra.mxu0 0.0
        %188 = vmatpush.msra.mxu0 0.0
        %189 = vmatpush.msra.mxu0 0.0
        %190 = vmatpush.msra.mxu0 0.0
        %191 = vmatpush.msra.mxu0 0.0
        %192 = vmatpush.msra.mxu0 0.0
        %193 = vmatpush.msra.mxu0 0.0
        %194 = vmatpush.msra.mxu0 0.0
        %195 = vmatpush.msra.mxu0 0.0
        %196 = vmatpush.msra.mxu0 0.0
        %197 = vmatpush.msra.mxu0 0.0
        %198 = vmatpush.msra.mxu0 0.0
        %199 = vmatpush.msra.mxu0 0.0
        %200 = vmatpush.msra.mxu0 0.0
        %201 = vmatpush.msra.mxu0 0.0
        %202 = vmatpush.msra.mxu0 %v182
        %203 = vmatmul.f32.gmra.mxu0 %v185
        %v204 = vpop.f32.mrf.mxu0
        %v205 = vadd.f32 0.0, %v204
        %206 = vdwg.mxu0
        %vm207 = vcmask 130048
        %208 = vst.msk [vmem:[%s178] sm:$0xff] %vm207, %v205
        %s209 = scalar_lea.vmem %s157, 8 [#allocation5]
        %v210 = vld [vmem:[%s209] sm:$0xff]
        %211 = vmatpush.msra.mxu0 0.0
        %212 = vmatpush.msra.mxu0 0.0
        %213 = vmatpush.msra.mxu0 0.0
        %214 = vmatpush.msra.mxu0 0.0
        %215 = vmatpush.msra.mxu0 0.0
        %216 = vmatpush.msra.mxu0 0.0
        %217 = vmatpush.msra.mxu0 0.0
        %218 = vmatpush.msra.mxu0 0.0
        %219 = vmatpush.msra.mxu0 0.0
        %220 = vmatpush.msra.mxu0 0.0
        %221 = vmatpush.msra.mxu0 0.0
        %222 = vmatpush.msra.mxu0 0.0
        %223 = vmatpush.msra.mxu0 0.0
        %224 = vmatpush.msra.mxu0 0.0
        %225 = vmatpush.msra.mxu0 0.0
        %226 = vmatpush.msra.mxu0 %v210
        %227 = vmatmul.f32.gmra.mxu0 %v185
        %v228 = vpop.f32.mrf.mxu0
        %v229 = vadd.f32 0.0, %v228
        %230 = vdwg.mxu0
        %s231 = scalar_lea.vmem %s178, 8 [#allocation7]
        %232 = vst.msk [vmem:[%s231] sm:$0xff] %vm207, %v229
        %s233 = scalar_lea.vmem %s157, 16 [#allocation5]
        %v234 = vld [vmem:[%s233] sm:$0xff]
        %235 = vmatpush.msra.mxu0 0.0
        %236 = vmatpush.msra.mxu0 0.0
        %237 = vmatpush.msra.mxu0 0.0
        %238 = vmatpush.msra.mxu0 0.0
        %239 = vmatpush.msra.mxu0 0.0
        %240 = vmatpush.msra.mxu0 0.0
        %241 = vmatpush.msra.mxu0 0.0
        %242 = vmatpush.msra.mxu0 0.0
        %243 = vmatpush.msra.mxu0 0.0
        %244 = vmatpush.msra.mxu0 0.0
        %245 = vmatpush.msra.mxu0 0.0
        %246 = vmatpush.msra.mxu0 0.0
        %247 = vmatpush.msra.mxu0 0.0
        %248 = vmatpush.msra.mxu0 0.0
        %249 = vmatpush.msra.mxu0 0.0
        %250 = vmatpush.msra.mxu0 %v234
        %251 = vmatmul.f32.gmra.mxu0 %v185
        %v252 = vpop.f32.mrf.mxu0
        %v253 = vadd.f32 0.0, %v252
        %254 = vdwg.mxu0
        %s255 = scalar_lea.vmem %s178, 16 [#allocation7]
        %256 = vst.msk [vmem:[%s255] sm:$0xff] %vm207, %v253
        %s257 = scalar_lea.vmem %s157, 24 [#allocation5]
        %v258 = vld [vmem:[%s257] sm:$0xff]
        %259 = vmatpush.msra.mxu0 0.0
        %260 = vmatpush.msra.mxu0 0.0
        %261 = vmatpush.msra.mxu0 0.0
        %262 = vmatpush.msra.mxu0 0.0
        %263 = vmatpush.msra.mxu0 0.0
        %264 = vmatpush.msra.mxu0 0.0
        %265 = vmatpush.msra.mxu0 0.0
        %266 = vmatpush.msra.mxu0 0.0
        %267 = vmatpush.msra.mxu0 0.0
        %268 = vmatpush.msra.mxu0 0.0
        %269 = vmatpush.msra.mxu0 0.0
        %270 = vmatpush.msra.mxu0 0.0
        %271 = vmatpush.msra.mxu0 0.0
        %272 = vmatpush.msra.mxu0 0.0
        %273 = vmatpush.msra.mxu0 0.0
        %274 = vmatpush.msra.mxu0 %v258
        %275 = vmatmul.f32.gmra.mxu0 %v185
        %v276 = vpop.f32.mrf.mxu0
        %v277 = vadd.f32 0.0, %v276
        %278 = vdwg.mxu0
        %s279 = scalar_lea.vmem %s178, 24 [#allocation7]
        %280 = vst.msk [vmem:[%s279] sm:$0xff] %vm207, %v277
        %s281 = sand.u32 %s75, 1
        %s282 = scalar_lea.sflag [#allocation4], %s281
        %s283 = sand.u32 %s75, 1
        %s284 = smul.addr %s283, 32
        %s285 = scalar_lea.vmem [#allocation7], %s284
        // Predicated region
        $region37: #{tpu_custom_call.1} parent=27 // pred_check
          %p286 = pneg %p85
        $region38: #{tpu_custom_call.1} parent=27 // pred_check_branch
          %288 = sbr.rel (%p286) target = $region40
        $region39: #{tpu_custom_call.1} parent=27 // pred_region
          %s289 = smul.u32 4, %s20
          %291 = vsyncadd %s282, 0
          %s292 = smul.addr %s289, 8
          %s293 = scalar_lea.hbm %s2, %s292
          %s294 = sshll.u32 %s285, 4
          %s295 = int_to_ptr.vmem [resolvable:$true] %s294
          %s296 = sshll.u32 %s293, 4
          %s297 = int_to_ptr.hbm [resolvable:$true] %s296
          %302 = dma.vmem_to_hbm [thread:$0]  %s295, 512, %s297, %s282, 128, 128, 8
        $region40: #{tpu_custom_call.1} parent=27 // pred_fallthru
          _
      $region28: #{tpu_custom_call.1} parent=5 // pred_fallthru
        _
      %p303 = scmp.le.s32.totalorder 2, %s15
      // Predicated region
      $region41: #{tpu_custom_call.1} parent=5 // pred_check
        %p304 = pneg %p303
      $region42: #{tpu_custom_call.1} parent=5 // pred_check_branch
        %306 = sbr.rel (%p304) target = $region44
      $region43: #{tpu_custom_call.1} parent=5 // pred_region
        %s307 = ssub.s32 %s15, 2
        // Predicated region
        $region45: #{tpu_custom_call.1} parent=43 // pred_check
          %p308 = pneg %p91
        $region46: #{tpu_custom_call.1} parent=43 // pred_check_branch
          %310 = sbr.rel (%p308) target = $region48
        $region47: #{tpu_custom_call.1} parent=43 // pred_region
          %s311 = sand.u32 %s76, 1
          %s312 = scalar_lea.sflag [#allocation4], %s311
          %s313 = sand.u32 %s76, 1
          %s314 = smul.addr %s313, 32
          %s315 = scalar_lea.vmem [#allocation7], %s314
          %317 = dma.done %s312, 512
        $region48: #{tpu_custom_call.1} parent=43 // pred_fallthru
          _
      $region44: #{tpu_custom_call.1} parent=5 // pred_fallthru
        _
    $region6: #{tpu_custom_call.1} parent=1 // loop_footer
      %s19 = sadd.s32 1, %s15
    $region7: #{tpu_custom_call.1} parent=1 // loop_footer_branch
      %14 = sbr.rel target = $region3
    $region8: #{tpu_custom_call.1} parent=1 // loop_exit
      _
    %318 = vsyncpa [#allocation3], 1
    %s319 = scalar_lea.sflag [#allocation3], 1
    %320 = vsyncpa %s319, 1
    %321 = vsyncpa [#allocation6], 1
    %s322 = scalar_lea.sflag [#allocation6], 1
    %323 = vsyncpa %s322, 1
    %324 = vsyncpa [#allocation4], 1
    %s325 = scalar_lea.sflag [#allocation4], 1
    %326 = vsyncpa %s325, 1

</llo_original>
